<compile_context>
chip_gen: v7x
topology: tpu7x:2x2x1
jax: 0.10.0
libtpu: 0.0.40
codegen_flags: <defaults>
</compile_context>

<pallas_src>
import jax
import jax.numpy as jnp
from jax.experimental import pallas as pl
from jax.experimental.pallas import tpu as pltpu


def _all_decoders_kernel(x_ref, w_ref, b_ref, o_ref):
    # x_ref: (C, T)        channels-major pixel tile (pixels on lanes)
    # w_ref: (K*NCLS, C)   fused decoder weights (resident across the grid)
    # b_ref: (K*NCLS, 1)   fused biases
    # o_ref: (K*NCLS, T)   fused, lane-dense output tile
    y = jnp.dot(w_ref[...], x_ref[...], preferred_element_type=jnp.float32)
    o_ref[...] = (y + b_ref[...]).astype(o_ref.dtype)


def _pick_tile_hw(hw, max_tile=2048):
    """Largest multiple of 128 that divides hw and is <= max_tile.

    Falls back to the full extent (always a legal block) if hw is not a
    multiple of 128.
    """
    if hw % 128 != 0:
        return hw
    t = min(max_tile, hw)
    t -= t % 128
    while hw % t != 0:
        t -= 128
    return t


def all_decoders_forward(x_nchw, fused_w, fused_b, *, max_tile_hw=2048):
    """Run all K fused linear decoders on the same input.

    x_nchw:  (N, C, H, W)      float32
    fused_w: (K*NCLS, C)       float32 (per-decoder 1x1-conv weights, stacked)
    fused_b: (K*NCLS, 1)       float32
    returns: (N, K*NCLS, H, W) float32
    """
    N, C, H, W = x_nchw.shape
    KN, Cw = fused_w.shape
    assert Cw == C
    HW = H * W

    # NCHW -> (N, C, H*W): merges trailing dims only, no HBM transpose.
    x_flat = x_nchw.reshape(N, C, HW)

    tile_hw = _pick_tile_hw(HW, max_tile_hw)
    grid = (N, HW // tile_hw)

    out = pl.pallas_call(
        _all_decoders_kernel,
        out_shape=jax.ShapeDtypeStruct((N, KN, HW), jnp.float32),
        grid_spec=pltpu.PrefetchScalarGridSpec(
            num_scalar_prefetch=0,
            grid=grid,
            in_specs=[
                # pixel tile: (C, tile_hw), input streamed exactly once
                pl.BlockSpec((pl.Squeezed(), C, tile_hw),
                             lambda n, m: (n, 0, m)),
                # fused weights / biases: same block every step -> stay in VMEM
                pl.BlockSpec((KN, C), lambda n, m: (0, 0)),
                pl.BlockSpec((KN, 1), lambda n, m: (0, 0)),
            ],
            out_specs=pl.BlockSpec((pl.Squeezed(), KN, tile_hw),
                                   lambda n, m: (n, 0, m)),
        ),
        compiler_params=pltpu.CompilerParams(
            dimension_semantics=("parallel", "parallel")
        ),
    )(x_flat, fused_w, fused_b)

    # (N, K*NCLS, H*W) -> (N, K*NCLS, H, W): free reshape, no transpose.
    return out.reshape(N, KN, H, W)


class AllDecoders:
    """JAX/Pallas equivalent of the PyTorch AllDecoders module.

    Holds a dict of linear (1x1-conv) decoders and returns
    {name: decoder(inputs)} from forward(), computed by one fused Pallas call.
    """

    def __init__(self, decoders_dict, decoder_type="linear"):
        # decoders_dict: {name: (weight (NCLS, C), bias (NCLS,))}, matching a
        # Conv2d(in_channels, num_classes, kernel_size=(1,1)) parameterization.
        self.names = list(decoders_dict.keys())
        self.decoder_type = decoder_type
        ws = [jnp.asarray(decoders_dict[n][0]) for n in self.names]  # (NCLS, C)
        bs = [jnp.asarray(decoders_dict[n][1]) for n in self.names]  # (NCLS,)
        self.num_classes = ws[0].shape[0]
        # Fuse all decoders: one (K*NCLS, C) weight and one (K*NCLS, 1) bias.
        self.fused_w = jnp.concatenate(ws, axis=0)
        self.fused_b = jnp.concatenate(bs, axis=0)[:, None]

    def __len__(self):
        return len(self.names)

    def forward(self, inputs):
        fused = all_decoders_forward(inputs, self.fused_w, self.fused_b)
        ncls = self.num_classes
        # Per-decoder slice of the class axis is already NCHW; no transpose.
        return {
            name: fused[:, i * ncls:(i + 1) * ncls]
            for i, name in enumerate(self.names)
        }


def _reference_forward(x_nchw, decoders_dict):
    # Pure-JAX reference: per-decoder 1x1 conv (einsum over channel axis).
    out = {}
    for name, (w, b) in decoders_dict.items():
        y = jnp.einsum("nchw,oc->nohw", x_nchw, w) + b[None, :, None, None]
        out[name] = y
    return out


if __name__ == "__main__":
    key = jax.random.PRNGKey(0)

    N, C, H, W = 2, 32, 16, 16
    NCLS = 8
    decoder_names = ["decoder_lr_0p001", "decoder_lr_0p01", "decoder_lr_0p1"]

    k_x, *k_params = jax.random.split(key, 1 + 2 * len(decoder_names))
    x = jax.random.normal(k_x, (N, C, H, W), dtype=jnp.float32)

    decoders_dict = {}
    for i, name in enumerate(decoder_names):
        kw, kb = k_params[2 * i], k_params[2 * i + 1]
        w = jax.random.normal(kw, (NCLS, C), dtype=jnp.float32) * 0.05
        b = jax.random.normal(kb, (NCLS,), dtype=jnp.float32) * 0.01
        decoders_dict[name] = (w, b)

    model = AllDecoders(decoders_dict, decoder_type="linear")

    result = model.forward(x)
    jax.block_until_ready(result)

    # Verify against the pure-JAX reference.
    ref = _reference_forward(x, decoders_dict)
    for name in decoder_names:
        assert result[name].shape == (N, NCLS, H, W)
        err = jnp.max(jnp.abs(result[name] - ref[name]))
        assert err < 1e-4, f"{name}: max err {err}"

    print("KERNEL_OK")
</pallas_src>

<mosaic_0001>
module attributes {stable_mosaic.version = 11 : i64} {
  func.func @_all_decoders_kernel(%arg0: i32, %arg1: i32, %arg2: memref<1x32x256xf32, #tpu.memory_space<vmem>>, %arg3: memref<24x32xf32, #tpu.memory_space<vmem>>, %arg4: memref<24x1xf32, #tpu.memory_space<vmem>>, %arg5: memref<1x24x256xf32, #tpu.memory_space<vmem>>) attributes {dimension_semantics = [#tpu.dimension_semantics<parallel>, #tpu.dimension_semantics<parallel>], iteration_bounds = array<i64: 2, 1>, scalar_prefetch = 0 : i64, scratch_operands = 0 : i64, tpu.core_type = #tpu.core_type<tc>, window_params = [{transform_indices = @transform_0, window_bounds = array<i64: 1, 32, 256>}, {pipeline_mode = #tpu.pipeline_mode<synchronous>, transform_indices = @transform_1, window_bounds = array<i64: 24, 32>}, {pipeline_mode = #tpu.pipeline_mode<synchronous>, transform_indices = @transform_2, window_bounds = array<i64: 24, 1>}, {transform_indices = @transform_3, window_bounds = array<i64: 1, 24, 256>}]} {
    %c0 = arith.constant 0 : index
    %c0_0 = arith.constant 0 : index
    %0 = vector.load %arg3[%c0, %c0_0] : memref<24x32xf32, #tpu.memory_space<vmem>>, vector<24x32xf32>
    %c0_1 = arith.constant 0 : index
    %c0_2 = arith.constant 0 : index
    %c0_3 = arith.constant 0 : index
    %1 = vector.load %arg2[%c0_1, %c0_2, %c0_3] : memref<1x32x256xf32, #tpu.memory_space<vmem>>, vector<1x32x256xf32>
    %2 = vector.shape_cast %1 : vector<1x32x256xf32> to vector<32x256xf32>
    %cst = arith.constant dense<0.000000e+00> : vector<24x256xf32>
    %3 = tpu.matmul %0, %2, %cst {dimension_numbers = #tpu.dot_dimension_numbers<[1], [0], [0], [1], [0, 0, 1, 1], [], []>} : vector<24x32xf32>, vector<32x256xf32>, vector<24x256xf32> -> vector<24x256xf32>
    %c0_4 = arith.constant 0 : index
    %c0_5 = arith.constant 0 : index
    %4 = vector.load %arg4[%c0_4, %c0_5] : memref<24x1xf32, #tpu.memory_space<vmem>>, vector<24x1xf32>
    %5 = vector.broadcast %4 : vector<24x1xf32> to vector<24x256xf32>
    %6 = arith.addf %3, %5 : vector<24x256xf32>
    %c0_6 = arith.constant 0 : index
    %c0_7 = arith.constant 0 : index
    %c0_8 = arith.constant 0 : index
    %7 = vector.load %arg5[%c0_6, %c0_7, %c0_8] : memref<1x24x256xf32, #tpu.memory_space<vmem>>, vector<1x24x256xf32>
    %8 = vector.shape_cast %7 : vector<1x24x256xf32> to vector<24x256xf32>
    %9 = vector.shape_cast %6 : vector<24x256xf32> to vector<1x24x256xf32>
    tpu.vector_store %arg5[%c0_6, %c0_7, %c0_8], %9 {strides = array<i32>} : memref<1x24x256xf32, #tpu.memory_space<vmem>>, vector<1x24x256xf32>,
    return
  }
  func.func @transform_0(%arg0: i32, %arg1: i32) -> (i32, i32, i32) {
    %c0_i32 = arith.constant 0 : i32
    %c0_i32_0 = arith.constant 0 : i32
    return %arg0, %c0_i32, %arg1 : i32, i32, i32
  }
  func.func @transform_1(%arg0: i32, %arg1: i32) -> (i32, i32) {
    %c0_i32 = arith.constant 0 : i32
    %c0_i32_0 = arith.constant 0 : i32
    %c0_i32_1 = arith.constant 0 : i32
    return %c0_i32, %c0_i32_0 : i32, i32
  }
  func.func @transform_2(%arg0: i32, %arg1: i32) -> (i32, i32) {
    %c0_i32 = arith.constant 0 : i32
    %c0_i32_0 = arith.constant 0 : i32
    %c0_i32_1 = arith.constant 0 : i32
    return %c0_i32, %c0_i32_0 : i32, i32
  }
  func.func @transform_3(%arg0: i32, %arg1: i32) -> (i32, i32, i32) {
    %c0_i32 = arith.constant 0 : i32
    %c0_i32_0 = arith.constant 0 : i32
    return %arg0, %c0_i32, %arg1 : i32, i32, i32
  }
}

</mosaic_0001>

<llo_original>
// kernel: tpu_custom_call.1
$region0: #{tpu_custom_call.1}
  #allocation0 [shape = 'u32[]', space=smem, size = 0x4, offset = 0x4, fixed_abs, tag = 'smem constant byte address 0x4 - core index']
  #allocation1 [shape = 'u32[144,128]{1,0:T(1,128)}', space=vmem, size = 0x12000, scoped, tag = 'internal scratch']
  %s0 = inlined_call_operand.hbm [shape: f32[2,32,256], index: 0, kind: input, shape index: {}]
  %s1 = inlined_call_operand.vmem [shape: f32[24,32], index: 1, kind: input, shape index: {}]
  %s2 = inlined_call_operand.vmem [shape: f32[24,1], index: 2, kind: input, shape index: {}]
  %s3 = inlined_call_operand.hbm [shape: f32[2,24,256], index: 3, kind: output, shape index: {}]
  %s4 = sld [smem:[#allocation0]]
  $region49: #{tpu_custom_call.1} parent=0
    _
  %s6 = ssub.s32 1, %s4
  %s7 = scalar_select 0, %s6, %s4
  $region1: #{tpu_custom_call.1} parent=0
    #allocation2 [shape = 'u8[65536]{0}', space=vmem, size = 0x10000, scoped, tag = 'input window, operand 0']
    #allocation3 [shape = 's32[2]{0}', space=sflag, size = 0x8, scoped, tag = 'scoped memory for tpu_custom_call.1']
    #allocation4 [shape = 's32[2]{0}', space=sflag, size = 0x8, scoped, tag = 'scoped memory for tpu_custom_call.1']
    #allocation5 [shape = 'u8[49152]{0}', space=vmem, size = 0xc000, scoped, tag = 'output window, operand 0']
    %8 = vsyncpa [#allocation3], 0
    %s9 = scalar_lea.sflag [#allocation3], 1
    %10 = vsyncpa %s9, 0
    %11 = vsyncpa [#allocation4], 0
    %s12 = scalar_lea.sflag [#allocation4], 1
    %13 = vsyncpa %s12, 0
    loop: start=0, step=1, limit=4
    $region2: #{tpu_custom_call.1} parent=1 // loop_pre_header
      _
    $region3: #{tpu_custom_call.1} parent=1 // loop_header
      %s15 = sphi 0, %s19
      %p16 = scmp.ge.s32.totalorder %s15, 4
      %s22 = sphi 0, %s34
      %s23 = sphi 0, %s30
      %s24 = sphi 0, %s22
      %s25 = sphi 0, %s23
      %s26 = sphi 0, %s24
      %s27 = sphi 0, %s25
      %s39 = sphi 0, %s41
      %s42 = sphi 0, %s39
      %s43 = sphi 0, %s42
      %s59 = sphi 0, %s43
      %s63 = sphi 0, %s63
      %s65 = sphi 0, %s63
      %s66 = sphi 0, %s65
      %s80 = sphi 0, %s66
      %s84 = sphi 0, %s84
      %s86 = sphi 0, %s84
      %s87 = sphi 0, %s86
      %s101 = sphi 0, %s87
      %s109 = sphi 0, %s111
      %s112 = sphi 0, %s109
      %s113 = sphi 0, %s112
      %s129 = sphi 0, %s113
    $region4: #{tpu_custom_call.1} parent=1 // loop_header_branch
      %18 = sbr.rel (%p16) target = $region8
    $region5: #{tpu_custom_call.1} parent=1 // loop_body
      %s20 = ssub.s32 %s15, 1
      %s21 = ssub.s32 %s15, 2
      %s28 = sadd.s32 1, %s23
      %p29 = scmp.ge.s32.totalorder %s28, 1
      %s30 = scalar_select %p29, 0, %s28
      %s31 = sadd.s32 1, %s22
      %s32 = scalar_select %p29, %s31, %s22
      %p33 = scmp.ge.s32.totalorder %s32, 2
      %s34 = scalar_select %p33, 0, %s32
      %s35 = ssub.s32 %s22, %s34
      %s36 = ssub.s32 %s23, %s30
      %s37 = sor.u32 %s35, %s36
      %p38 = scmp.eq.s32.totalorder %s37, 0
      %s40 = sadd.s32 %s39, 1
      %s41 = scalar_select %p38, %s39, %s40
      %p44 = pneg %p38
      %p45 = scmp.eq.s32.totalorder %s15, 1
      %p46 = por %p44, %p45
      %p47 = scmp.ne.s32.totalorder %s39, %s42
      %p48 = scmp.eq.s32.totalorder %s15, 0
      %p49 = por %p47, %p48
      %p50 = scmp.ne.s32.totalorder %s39, %s42
      %p51 = scmp.eq.s32.totalorder %s20, 1
      %p52 = por %p50, %p51
      %p53 = scmp.ne.s32.totalorder %s42, %s43
      %p54 = scmp.eq.s32.totalorder %s20, 0
      %p55 = por %p53, %p54
      %p56 = scmp.ne.s32.totalorder %s42, %s43
      %p57 = scmp.eq.s32.totalorder %s21, 1
      %p58 = por %p56, %p57
      %p60 = scmp.ne.s32.totalorder %s43, %s59
      %p61 = scmp.eq.s32.totalorder %s21, 0
      %p62 = por %p60, %p61
      %s64 = sadd.s32 %s63, 1
      %p67 = scmp.eq.s32.totalorder %s15, 1
      %p68 = scmp.ne.s32.totalorder %s63, %s65
      %p69 = scmp.eq.s32.totalorder %s15, 0
      %p70 = por %p68, %p69
      %p71 = scmp.ne.s32.totalorder %s63, %s65
      %p72 = scmp.eq.s32.totalorder %s20, 1
      %p73 = por %p71, %p72
      %p74 = scmp.ne.s32.totalorder %s65, %s66
      %p75 = scmp.eq.s32.totalorder %s20, 0
      %p76 = por %p74, %p75
      %p77 = scmp.ne.s32.totalorder %s65, %s66
      %p78 = scmp.eq.s32.totalorder %s21, 1
      %p79 = por %p77, %p78
      %p81 = scmp.ne.s32.totalorder %s66, %s80
      %p82 = scmp.eq.s32.totalorder %s21, 0
      %p83 = por %p81, %p82
      %s85 = sadd.s32 %s84, 1
      %p88 = scmp.eq.s32.totalorder %s15, 1
      %p89 = scmp.ne.s32.totalorder %s84, %s86
      %p90 = scmp.eq.s32.totalorder %s15, 0
      %p91 = por %p89, %p90
      %p92 = scmp.ne.s32.totalorder %s84, %s86
      %p93 = scmp.eq.s32.totalorder %s20, 1
      %p94 = por %p92, %p93
      %p95 = scmp.ne.s32.totalorder %s86, %s87
      %p96 = scmp.eq.s32.totalorder %s20, 0
      %p97 = por %p95, %p96
      %p98 = scmp.ne.s32.totalorder %s86, %s87
      %p99 = scmp.eq.s32.totalorder %s21, 1
      %p100 = por %p98, %p99
      %p102 = scmp.ne.s32.totalorder %s87, %s101
      %p103 = scmp.eq.s32.totalorder %s21, 0
      %p104 = por %p102, %p103
      %s105 = ssub.s32 %s22, %s34
      %s106 = ssub.s32 %s23, %s30
      %s107 = sor.u32 %s105, %s106
      %p108 = scmp.eq.s32.totalorder %s107, 0
      %s110 = sadd.s32 %s109, 1
      %s111 = scalar_select %p108, %s109, %s110
      %p114 = pneg %p108
      %p115 = scmp.eq.s32.totalorder %s15, 1
      %p116 = por %p114, %p115
      %p117 = scmp.ne.s32.totalorder %s109, %s112
      %p118 = scmp.eq.s32.totalorder %s15, 0
      %p119 = por %p117, %p118
      %p120 = scmp.ne.s32.totalorder %s109, %s112
      %p121 = scmp.eq.s32.totalorder %s20, 1
      %p122 = por %p120, %p121
      %p123 = scmp.ne.s32.totalorder %s112, %s113
      %p124 = scmp.eq.s32.totalorder %s20, 0
      %p125 = por %p123, %p124
      %p126 = scmp.ne.s32.totalorder %s112, %s113
      %p127 = scmp.eq.s32.totalorder %s21, 1
      %p128 = por %p126, %p127
      %p130 = scmp.ne.s32.totalorder %s113, %s129
      %p131 = scmp.eq.s32.totalorder %s21, 0
      %p132 = por %p130, %p131
      %p133 = scmp.le.s32.totalorder 1, %s15
      %p134 = scmp.lt.s32.totalorder %s15, 3
      %p135 = pnand %p133, %p134
      %p136 = pneg %p135
      // Predicated region
      $region9: #{tpu_custom_call.1} parent=5 // pred_check
        _
      $region10: #{tpu_custom_call.1} parent=5 // pred_check_branch
        %138 = sbr.rel (%p135) target = $region12
      $region11: #{tpu_custom_call.1} parent=5 // pred_region
        %s139 = ssub.s32 %s15, 1
        // Predicated region
        $region13: #{tpu_custom_call.1} parent=11 // pred_check
          %p140 = pneg %p76
        $region14: #{tpu_custom_call.1} parent=11 // pred_check_branch
          %142 = sbr.rel (%p140) target = $region16
        $region15: #{tpu_custom_call.1} parent=11 // pred_region
          _
        $region16: #{tpu_custom_call.1} parent=11 // pred_fallthru
          _
        // Predicated region
        $region17: #{tpu_custom_call.1} parent=11 // pred_check
          %p143 = pneg %p97
        $region18: #{tpu_custom_call.1} parent=11 // pred_check_branch
          %145 = sbr.rel (%p143) target = $region20
        $region19: #{tpu_custom_call.1} parent=11 // pred_region
          _
        $region20: #{tpu_custom_call.1} parent=11 // pred_fallthru
          _
      $region12: #{tpu_custom_call.1} parent=5 // pred_fallthru
        _
      %p146 = scmp.lt.s32.totalorder %s15, 2
      // Predicated region
      $region21: #{tpu_custom_call.1} parent=5 // pred_check
        %p147 = pneg %p146
      $region22: #{tpu_custom_call.1} parent=5 // pred_check_branch
        %149 = sbr.rel (%p147) target = $region24
      $region23: #{tpu_custom_call.1} parent=5 // pred_region
        // Predicated region
        $region25: #{tpu_custom_call.1} parent=23 // pred_check
          %p150 = pneg %p49
        $region26: #{tpu_custom_call.1} parent=23 // pred_check_branch
          %152 = sbr.rel (%p150) target = $region28
        $region27: #{tpu_custom_call.1} parent=23 // pred_region
          %s153 = sand.u32 %s39, 1
          %s154 = scalar_lea.sflag [#allocation3], %s153
          %s155 = sand.u32 %s39, 1
          %s156 = smul.addr %s155, 64
          %s157 = scalar_lea.vmem [#allocation2], %s156
          %s158 = smul.u32 2, %s23
          %s160 = ssub.s32 1024, 1024
          %161 = vsyncadd %s154, %s160
          %s162 = smul.addr %s22, 8
          %s163 = sadd.s32 %s158, %s162
          %s164 = smul.addr %s163, 128
          %s165 = scalar_lea.hbm %s0, %s164
          %s166 = sshll.u32 %s157, 4
          %s167 = int_to_ptr.vmem [resolvable:$true] %s166
          %172 = dma.hbm_to_vmem [thread:$0]  %s165, 1024, %s167, %s154, 256, 256, 16
        $region28: #{tpu_custom_call.1} parent=23 // pred_fallthru
          _
      $region24: #{tpu_custom_call.1} parent=5 // pred_fallthru
        _
      %p173 = scmp.le.s32.totalorder 1, %s15
      %p174 = scmp.lt.s32.totalorder %s15, 3
      %p175 = pnand %p173, %p174
      %p176 = pneg %p175
      // Predicated region
      $region29: #{tpu_custom_call.1} parent=5 // pred_check
        _
      $region30: #{tpu_custom_call.1} parent=5 // pred_check_branch
        %178 = sbr.rel (%p175) target = $region32
      $region31: #{tpu_custom_call.1} parent=5 // pred_region
        %s179 = ssub.s32 %s15, 1
        %s180 = sand.u32 %s42, 1
        %s181 = scalar_lea.sflag [#allocation3], %s180
        %s182 = sand.u32 %s42, 1
        %s183 = smul.addr %s182, 64
        %s184 = scalar_lea.vmem [#allocation2], %s183
        // Predicated region
        $region33: #{tpu_custom_call.1} parent=31 // pred_check
          %p185 = pneg %p55
        $region34: #{tpu_custom_call.1} parent=31 // pred_check_branch
          %187 = sbr.rel (%p185) target = $region36
        $region35: #{tpu_custom_call.1} parent=31 // pred_region
          %188 = dma.done %s181, 1024
        $region36: #{tpu_custom_call.1} parent=31 // pred_fallthru
          _
        %s189 = sand.u32 %s42, 1
        %s190 = scalar_lea.sflag [#allocation3], %s189
        %s191 = sand.u32 %s42, 1
        %s192 = smul.addr %s191, 64
        %s193 = scalar_lea.vmem [#allocation2], %s192
        %p194 = pneg %p55
        %p195 = pneg %p52
        %p196 = pneg %p76
        %p197 = pneg %p73
        %p198 = pneg %p97
        %p199 = pneg %p94
        %p200 = pneg %p125
        %p201 = pneg %p122
        %s202 = sand.u32 %s112, 1
        %s203 = scalar_lea.sflag [#allocation4], %s202
        %s204 = sand.u32 %s112, 1
        %s205 = smul.addr %s204, 48
        %s206 = scalar_lea.vmem [#allocation5], %s205
        %s207 = smul.u32 2, %s25
        %s208 = smul.u32 2, %s25
        %v209 = vld [vmem:[%s1] sm:$0xff]
        %v210 = vld [vmem:[%s1 + $0x8] sm:$0xff]
        %v211 = vld [vmem:[%s1 + $0x10] sm:$0xff]
        %v212 = vld [vmem:[%s184] sm:$0xff]
        %v213 = vld [vmem:[%s184 + $0x8] sm:$0xff]
        %v214 = vld [vmem:[%s184 + $0x10] sm:$0xff]
        %v215 = vld [vmem:[%s184 + $0x18] sm:$0xff]
        %v216 = vld [vmem:[%s184 + $0x20] sm:$0xff]
        %v217 = vld [vmem:[%s184 + $0x28] sm:$0xff]
        %v218 = vld [vmem:[%s184 + $0x30] sm:$0xff]
        %v219 = vld [vmem:[%s184 + $0x38] sm:$0xff]
        %v220 = vld [vmem:[%s2] sm:$0xff]
        %v221 = vld [vmem:[%s2 + $0x8] sm:$0xff]
        %v222 = vld [vmem:[%s2 + $0x10] sm:$0xff]
        %224 = vset.pattern.permute.xlu0 0
        %225 = vperm.xlu0 %224, %v220
        %v226 = vpop.permute.xlu0 %225
        %229 = vset.pattern.permute.xlu0 0
        %230 = vperm.xlu0 %229, %v221
        %v231 = vpop.permute.xlu0 %230
        %234 = vset.pattern.permute.xlu0 0
        %235 = vperm.xlu0 %234, %v222
        %v236 = vpop.permute.xlu0 %235
        %vm238 = vcmask 261120
        %v240 = vsel %vm238, %v209, 0
        %v243 = vsel %vm238, %v210, 0
        %v246 = vsel %vm238, %v211, 0
        %248 = vmatprep.subr.mxu0 %v213
        %249 = vmatpush1.msra.mxu0 %v212
        %250 = vmatprep.subr.mxu0 %v215
        %251 = vmatpush1.msra.mxu0 %v214
        %252 = vmatprep.subr.mxu0 %v217
        %253 = vmatpush1.msra.mxu0 %v216
        %254 = vmatprep.subr.mxu0 %v219
        %255 = vmatpush1.msra.mxu0 %v218
        %256 = vmatprep.subr.mxu0 0.0
        %257 = vmatpush1.msra.mxu0 0.0
        %258 = vmatprep.subr.mxu0 0.0
        %259 = vmatpush1.msra.mxu0 0.0
        %260 = vmatprep.subr.mxu0 0.0
        %261 = vmatpush1.msra.mxu0 0.0
        %262 = vmatprep.subr.mxu0 0.0
        %263 = vmatpush1.msra.mxu0 0.0
        %264 = vmatprep.subr.mxu0 0.0
        %265 = vmatpush1.msra.mxu0 0.0
        %266 = vmatprep.subr.mxu0 0.0
        %267 = vmatpush1.msra.mxu0 0.0
        %268 = vmatprep.subr.mxu0 0.0
        %269 = vmatpush1.msra.mxu0 0.0
        %270 = vmatprep.subr.mxu0 0.0
        %271 = vmatpush1.msra.mxu0 0.0
        %272 = vmatprep.subr.mxu0 0.0
        %273 = vmatpush1.msra.mxu0 0.0
        %274 = vmatprep.subr.mxu0 0.0
        %275 = vmatpush1.msra.mxu0 0.0
        %276 = vmatprep.subr.mxu0 0.0
        %277 = vmatpush1.msra.mxu0 0.0
        %278 = vmatprep.subr.mxu0 0.0
        %279 = vmatpush1.msra.mxu0 0.0
        %280 = vmatprep.subr.mxu0 0.0
        %281 = vmatpush1.msra.mxu0 0.0
        %282 = vmatprep.subr.mxu0 0.0
        %283 = vmatpush1.msra.mxu0 0.0
        %284 = vmatprep.subr.mxu0 0.0
        %285 = vmatpush1.msra.mxu0 0.0
        %286 = vmatprep.subr.mxu0 0.0
        %287 = vmatpush1.msra.mxu0 0.0
        %288 = vmatprep.subr.mxu0 0.0
        %289 = vmatpush1.msra.mxu0 0.0
        %290 = vmatprep.subr.mxu0 0.0
        %291 = vmatpush1.msra.mxu0 0.0
        %292 = vmatprep.subr.mxu0 0.0
        %293 = vmatpush1.msra.mxu0 0.0
        %294 = vmatprep.subr.mxu0 0.0
        %295 = vmatpush1.msra.mxu0 0.0
        %296 = vmatprep.subr.mxu0 0.0
        %297 = vmatpush1.msra.mxu0 0.0
        %298 = vmatprep.subr.mxu0 0.0
        %299 = vmatpush1.msra.mxu0 0.0
        %300 = vmatprep.subr.mxu0 0.0
        %301 = vmatpush1.msra.mxu0 0.0
        %302 = vmatprep.subr.mxu0 0.0
        %303 = vmatpush1.msra.mxu0 0.0
        %304 = vmatprep.subr.mxu0 0.0
        %305 = vmatpush1.msra.mxu0 0.0
        %306 = vmatprep.subr.mxu0 0.0
        %307 = vmatpush1.msra.mxu0 0.0
        %308 = vmatprep.subr.mxu0 0.0
        %309 = vmatpush1.msra.mxu0 0.0
        %310 = vmatprep.subr.mxu0 0.0
        %311 = vmatpush1.msra.mxu0 0.0
        %312 = vmatprep.mubr.f32.mxu0 0.0
        %313 = vmatmul.mubr.f32.gmra.mrb[0].mxu0 %v240
        %v314 = vpop.f32.mrb[0].mxu0
        %v315 = vadd.f32 %v226, %v314
        %v316 = vpop.f32.mrb[0].mxu0
        %v317 = vadd.f32 %v226, %v316
        %318 = vmatprep.mubr.f32.mxu0 0.0
        %319 = vmatmul.mubr.f32.gmra.mrb[0].mxu0 %v243
        %v320 = vpop.f32.mrb[0].mxu0
        %v321 = vadd.f32 %v231, %v320
        %v322 = vpop.f32.mrb[0].mxu0
        %v323 = vadd.f32 %v231, %v322
        %324 = vmatprep.mubr.f32.mxu0 0.0
        %325 = vmatmul.mubr.f32.gmra.mrb[0].mxu0 %v246
        %v326 = vpop.f32.mrb[0].mxu0
        %v327 = vadd.f32 %v236, %v326
        %v328 = vpop.f32.mrb[0].mxu0
        %v329 = vadd.f32 %v236, %v328
        %330 = vdwg.mxu0
        %331 = vst [vmem:[%s206] sm:$0xff] %v315
        %332 = vst [vmem:[%s206 + $0x8] sm:$0xff] %v317
        %333 = vst [vmem:[%s206 + $0x10] sm:$0xff] %v321
        %334 = vst [vmem:[%s206 + $0x18] sm:$0xff] %v323
        %335 = vst [vmem:[%s206 + $0x20] sm:$0xff] %v327
        %336 = vst [vmem:[%s206 + $0x28] sm:$0xff] %v329
        %s337 = sand.u32 %s112, 1
        %s338 = scalar_lea.sflag [#allocation4], %s337
        %s339 = sand.u32 %s112, 1
        %s340 = smul.addr %s339, 48
        %s341 = scalar_lea.vmem [#allocation5], %s340
        // Predicated region
        $region37: #{tpu_custom_call.1} parent=31 // pred_check
          %p342 = pneg %p122
        $region38: #{tpu_custom_call.1} parent=31 // pred_check_branch
          %344 = sbr.rel (%p342) target = $region40
        $region39: #{tpu_custom_call.1} parent=31 // pred_region
          %s345 = smul.u32 2, %s25
          %s347 = ssub.s32 768, 768
          %348 = vsyncadd %s338, %s347
          %s349 = smul.addr %s24, 6
          %s350 = sadd.s32 %s345, %s349
          %s351 = smul.addr %s350, 128
          %s352 = scalar_lea.hbm %s3, %s351
          %s353 = sshll.u32 %s341, 4
          %s354 = int_to_ptr.vmem [resolvable:$true] %s353
          %359 = dma.vmem_to_hbm [thread:$0]  %s354, 768, %s352, %s338, 256, 256, 16
        $region40: #{tpu_custom_call.1} parent=31 // pred_fallthru
          _
      $region32: #{tpu_custom_call.1} parent=5 // pred_fallthru
        _
      %p360 = scmp.le.s32.totalorder 2, %s15
      // Predicated region
      $region41: #{tpu_custom_call.1} parent=5 // pred_check
        %p361 = pneg %p360
      $region42: #{tpu_custom_call.1} parent=5 // pred_check_branch
        %363 = sbr.rel (%p361) target = $region44
      $region43: #{tpu_custom_call.1} parent=5 // pred_region
        %s364 = ssub.s32 %s15, 2
        // Predicated region
        $region45: #{tpu_custom_call.1} parent=43 // pred_check
          %p365 = pneg %p128
        $region46: #{tpu_custom_call.1} parent=43 // pred_check_branch
          %367 = sbr.rel (%p365) target = $region48
        $region47: #{tpu_custom_call.1} parent=43 // pred_region
          %s368 = sand.u32 %s113, 1
          %s369 = scalar_lea.sflag [#allocation4], %s368
          %s370 = sand.u32 %s113, 1
          %s371 = smul.addr %s370, 48
          %s372 = scalar_lea.vmem [#allocation5], %s371
          %373 = dma.done %s369, 768
        $region48: #{tpu_custom_call.1} parent=43 // pred_fallthru
          _
      $region44: #{tpu_custom_call.1} parent=5 // pred_fallthru
        _
    $region6: #{tpu_custom_call.1} parent=1 // loop_footer
      %s19 = sadd.s32 1, %s15
    $region7: #{tpu_custom_call.1} parent=1 // loop_footer_branch
      %14 = sbr.rel target = $region3
    $region8: #{tpu_custom_call.1} parent=1 // loop_exit
      _
    %374 = vsyncpa [#allocation3], 1
    %s375 = scalar_lea.sflag [#allocation3], 1
    %376 = vsyncpa %s375, 1
    %377 = vsyncpa [#allocation4], 1
    %s378 = scalar_lea.sflag [#allocation4], 1
    %379 = vsyncpa %s378, 1

</llo_original>
